<compile_context>
chip_gen: v7x
topology: tpu7x:2x2x1
jax: 0.10.0
libtpu: 0.0.40
codegen_flags: <defaults>
</compile_context>

<pallas_src>
import functools

import jax
import jax.numpy as jnp
from jax.experimental import pallas as pl
from jax.experimental.pallas import tpu as pltpu

DEFAULT_MARGIN = 0.7
EPS = 1e-6  # F.pairwise_distance default eps (added to the difference)

_OUT_SUB = 8     # sublane extent of the per-tile partial-sum output block
_OUT_LANE = 128  # lane extent of the per-tile partial-sum output block


def _contrastive_loss_kernel(x1_ref, x2_ref, lbl_ref, o_ref,
                             *, n_rows, block_rows, margin):
    i = pl.program_id(0)

    # Cast to f32 only after the (possibly bf16) block is already in VMEM.
    x1 = x1_ref[...].astype(jnp.float32)             # (block_rows, D)
    x2 = x2_ref[...].astype(jnp.float32)             # (block_rows, D)
    lbl = lbl_ref[...]                                # (block_rows, 1) f32

    diff = x1 - x2 + EPS                              # (block_rows, D)
    d2 = jnp.sum(diff * diff, axis=-1, keepdims=True)  # (block_rows, 1)
    dist = jnp.sqrt(d2)
    hinge = jnp.maximum(margin - dist, 0.0)
    # Use d2 directly for the (1 - label) term; sqrt only feeds the hinge.
    per_pair = (1.0 - lbl) * d2 + lbl * (hinge * hinge)  # (block_rows, 1)

    # Mask tail rows of the last tile when n_rows % block_rows != 0.
    row = jax.lax.broadcasted_iota(jnp.int32, per_pair.shape, 0) + i * block_rows
    per_pair = jnp.where(row < n_rows, per_pair, 0.0)

    # Per-tile partial sum (XLU reduce; free filler under the DMA roofline),
    # broadcast into a lane-dense (1, 8, 128) output tile -> unmasked stores.
    partial = jnp.sum(per_pair, keepdims=True)        # (1, 1) f32
    o_ref[...] = jnp.broadcast_to(partial[None], o_ref.shape)


def _vmem_capacity_bytes():
    try:
        return int(pltpu.get_tpu_info().vmem_capacity_bytes)
    except Exception:
        return 64 << 20  # conservative (v7x-sized) fallback


def _sublane_count(itemsize):
    # 8 rows per vreg-sublane-tile for 4-byte, 16 for 2-byte, 32 for 1-byte.
    return max(8, 32 // max(1, itemsize))


def _round_up(x, m):
    return ((x + m - 1) // m) * m


def _pick_block_rows(n, d, feat_itemsize, vmem_cap):
    sub = _sublane_count(feat_itemsize)
    if n <= sub:
        return n                                   # one block spanning the batch

    # Pipeline-buffer VMEM budget, generation aware (leave ample headroom for
    # compiler scratch and the double-buffered output tiles).
    if vmem_cap <= (64 << 20):                     # v7x-class: 64 MiB per TC
        budget = 32 << 20
    else:                                          # v5e / v6e: 128 MiB
        budget = 48 << 20

    # VMEM bytes per batch row across all double-buffered tiles:
    #   2 feature inputs x 2 buffers x D x itemsize
    # + 2 buffers of the lane-padded (rows, 1) f32 label (128 lanes x 4 B).
    per_row_vmem = 2 * (2 * d * feat_itemsize) + 2 * (128 * 4)
    rows = budget // per_row_vmem

    # Keep each feature block in the 2-8 MiB sweet spot; bigger buys nothing.
    rows = min(rows, max(sub, (8 << 20) // max(1, d * feat_itemsize)))

    # Prefer >= ~4 grid steps when blocks would still be reasonably large, so
    # the v7x "parallel" axis has work for both TensorCores and the pipeline
    # has steps to overlap.
    parallel_cap = _round_up((n + 3) // 4, sub)
    if parallel_cap >= 256:
        rows = min(rows, parallel_cap)

    rows = max(sub, (rows // sub) * sub)
    if rows >= n:
        return n
    return rows


def contrastive_loss(output1, output2, label, margin=DEFAULT_MARGIN,
                     block_rows=None):
    """output1, output2: (N, D); label: (N,) or (N, 1). Returns scalar f32 loss."""
    n, d = output1.shape
    # Label is tiny (4 B/row of HBM traffic) -> cast to f32 in the wrapper so
    # the sublane requirement is always 8, independent of feature dtype.
    label2d = label.reshape(n, 1).astype(jnp.float32)

    feat_itemsize = jnp.dtype(output1.dtype).itemsize
    sub = _sublane_count(feat_itemsize)
    vmem_cap = _vmem_capacity_bytes()
    if block_rows is None:
        block_rows = _pick_block_rows(n, d, feat_itemsize, vmem_cap)
    assert block_rows == n or (block_rows > 0 and block_rows % sub == 0), (
        f"block_rows must equal N or be a multiple of {sub} for "
        f"{output1.dtype} features")
    num_tiles = pl.cdiv(n, block_rows)

    # VMEM accounting: features (2 inputs x 2 buffers), lane-padded labels
    # (2 buffers), double-buffered output tiles, plus compiler slack.
    needed = (2 * 2 * block_rows * d * feat_itemsize
              + 2 * block_rows * 128 * 4
              + 2 * _OUT_SUB * _OUT_LANE * 4
              + (2 << 20))
    vmem_limit = int(min(max(needed, 16 << 20), vmem_cap - (8 << 20)))

    kernel = functools.partial(
        _contrastive_loss_kernel,
        n_rows=n, block_rows=block_rows, margin=float(margin))

    grid_spec = pltpu.PrefetchScalarGridSpec(
        num_scalar_prefetch=0,
        grid=(num_tiles,),
        in_specs=[
            pl.BlockSpec((block_rows, d), lambda i: (i, 0)),
            pl.BlockSpec((block_rows, d), lambda i: (i, 0)),
            pl.BlockSpec((block_rows, 1), lambda i: (i, 0)),
        ],
        out_specs=pl.BlockSpec((1, _OUT_SUB, _OUT_LANE), lambda i: (i, 0, 0)),
    )

    partials = pl.pallas_call(
        kernel,
        out_shape=jax.ShapeDtypeStruct((num_tiles, _OUT_SUB, _OUT_LANE),
                                       jnp.float32),
        grid_spec=grid_spec,
        compiler_params=pltpu.CompilerParams(
            dimension_semantics=("parallel",),   # per-tile outputs -> megacore OK
            vmem_limit_bytes=vmem_limit,
        ),
    )(output1, output2, label2d)

    # Tiny final reduction over num_tiles partial sums; mean over the true N.
    return jnp.sum(partials[:, 0, 0]) / jnp.float32(n)


def _reference(output1, output2, label, margin=DEFAULT_MARGIN):
    # Pure-JAX reference mirroring the PyTorch forward.
    dist = jnp.sqrt(jnp.sum((output1 - output2 + EPS) ** 2, axis=-1))
    return jnp.mean((1.0 - label) * dist ** 2
                    + label * jnp.maximum(margin - dist, 0.0) ** 2)


if __name__ == "__main__":
    key = jax.random.PRNGKey(0)
    k1, k2, k3, k4, k5, k6 = jax.random.split(key, 6)

    # Small shapes; N % block_rows != 0 exercises the tail mask.
    N, D = 20, 64
    x1 = jax.random.normal(k1, (N, D), dtype=jnp.float32)
    x2 = jax.random.normal(k2, (N, D), dtype=jnp.float32)
    label = jax.random.bernoulli(k3, 0.5, (N,)).astype(jnp.float32)

    # Forced small tile -> 3 grid steps (parallel axis) with a masked tail tile.
    loss_tiled = contrastive_loss(x1, x2, label, block_rows=8)
    # Auto-picked tile (single full-array block at this size).
    loss_auto = contrastive_loss(x1, x2, label)
    jax.block_until_ready((loss_tiled, loss_auto))

    ref = _reference(x1, x2, label)
    assert jnp.allclose(loss_tiled, ref, rtol=1e-5, atol=1e-6), (loss_tiled, ref)
    assert jnp.allclose(loss_auto, ref, rtol=1e-5, atol=1e-6), (loss_auto, ref)

    # bf16 activations pass straight through the pallas_call (in-kernel f32 cast).
    x1_bf = x1.astype(jnp.bfloat16)
    x2_bf = x2.astype(jnp.bfloat16)
    loss_bf16 = contrastive_loss(x1_bf, x2_bf, label, block_rows=16)
    jax.block_until_ready(loss_bf16)
    ref_bf16 = _reference(x1_bf.astype(jnp.float32), x2_bf.astype(jnp.float32), label)
    assert jnp.allclose(loss_bf16, ref_bf16, rtol=1e-4, atol=1e-5), (loss_bf16, ref_bf16)

    # Larger batch exercises the auto byte-based multi-tile path (parallel grid
    # + masked tail) while staying modest in size.
    N2, D2 = 1040, 48
    y1 = jax.random.normal(k4, (N2, D2), dtype=jnp.float32)
    y2 = jax.random.normal(k5, (N2, D2), dtype=jnp.float32)
    lab2 = jax.random.bernoulli(k6, 0.5, (N2,)).astype(jnp.float32)
    loss_big = contrastive_loss(y1, y2, lab2)
    jax.block_until_ready(loss_big)
    ref_big = _reference(y1, y2, lab2)
    assert jnp.allclose(loss_big, ref_big, rtol=1e-5, atol=1e-6), (loss_big, ref_big)

    print("KERNEL_OK")
</pallas_src>

<mosaic_0001>
module attributes {stable_mosaic.version = 11 : i64} {
  func.func @_contrastive_loss_kernel(%arg0: i32, %arg1: memref<8x64xf32, #tpu.memory_space<vmem>>, %arg2: memref<8x64xf32, #tpu.memory_space<vmem>>, %arg3: memref<8x1xf32, #tpu.memory_space<vmem>>, %arg4: memref<1x8x128xf32, #tpu.memory_space<vmem>>) attributes {dimension_semantics = [#tpu.dimension_semantics<parallel>], iteration_bounds = array<i64: 3>, scalar_prefetch = 0 : i64, scratch_operands = 0 : i64, tpu.core_type = #tpu.core_type<tc>, window_params = [{transform_indices = @transform_0, window_bounds = array<i64: 8, 64>}, {transform_indices = @transform_1, window_bounds = array<i64: 8, 64>}, {transform_indices = @transform_2, window_bounds = array<i64: 8, 1>}, {transform_indices = @transform_3, window_bounds = array<i64: 1, 8, 128>}]} {
    %c0 = arith.constant 0 : index
    %c0_0 = arith.constant 0 : index
    %0 = vector.load %arg1[%c0, %c0_0] : memref<8x64xf32, #tpu.memory_space<vmem>>, vector<8x64xf32>
    %c0_1 = arith.constant 0 : index
    %c0_2 = arith.constant 0 : index
    %1 = vector.load %arg2[%c0_1, %c0_2] : memref<8x64xf32, #tpu.memory_space<vmem>>, vector<8x64xf32>
    %c0_3 = arith.constant 0 : index
    %c0_4 = arith.constant 0 : index
    %2 = vector.load %arg3[%c0_3, %c0_4] : memref<8x1xf32, #tpu.memory_space<vmem>>, vector<8x1xf32>
    %3 = arith.subf %0, %1 : vector<8x64xf32>
    %cst = arith.constant 9.99999997E-7 : f32
    %4 = vector.broadcast %cst : f32 to vector<8x64xf32>
    %5 = arith.addf %3, %4 : vector<8x64xf32>
    %6 = arith.mulf %5, %5 : vector<8x64xf32>
    %cst_5 = arith.constant dense<0.000000e+00> : vector<8xf32>
    %7 = vector.multi_reduction <add>, %6, %cst_5 [1] : vector<8x64xf32> to vector<8xf32>
    %8 = vector.shape_cast %7 : vector<8xf32> to vector<8x1xf32>
    %9 = math.sqrt %8 : vector<8x1xf32>
    %cst_6 = arith.constant 0.699999988 : f32
    %10 = vector.broadcast %cst_6 : f32 to vector<8x1xf32>
    %11 = arith.subf %10, %9 : vector<8x1xf32>
    %cst_7 = arith.constant 0.000000e+00 : f32
    %12 = vector.broadcast %cst_7 : f32 to vector<8x1xf32>
    %13 = arith.maximumf %11, %12 : vector<8x1xf32>
    %cst_8 = arith.constant 1.000000e+00 : f32
    %14 = vector.broadcast %cst_8 : f32 to vector<8x1xf32>
    %15 = arith.subf %14, %2 : vector<8x1xf32>
    %16 = arith.mulf %15, %8 : vector<8x1xf32>
    %17 = arith.mulf %13, %13 : vector<8x1xf32>
    %18 = arith.mulf %2, %17 : vector<8x1xf32>
    %19 = arith.addf %16, %18 : vector<8x1xf32>
    %20 = tpu.iota {dimensions = array<i32: 0>} : vector<8x1xi32>
    %c8_i32 = arith.constant 8 : i32
    %21 = arith.muli %arg0, %c8_i32 : i32
    %22 = vector.broadcast %21 : i32 to vector<8x1xi32>
    %23 = arith.addi %20, %22 : vector<8x1xi32>
    %c20_i32 = arith.constant 20 : i32
    %24 = vector.broadcast %c20_i32 : i32 to vector<8x1xi32>
    %25 = arith.cmpi slt, %23, %24 : vector<8x1xi32>
    %cst_9 = arith.constant 0.000000e+00 : f32
    %26 = vector.broadcast %cst_9 : f32 to vector<8x1xf32>
    %27 = arith.select %25, %19, %26 : vector<8x1xi1>, vector<8x1xf32>
    %28 = vector.shape_cast %27 : vector<8x1xf32> to vector<1x8x1xf32>
    %cst_10 = arith.constant dense<0.000000e+00> : vector<1xf32>
    %29 = vector.multi_reduction <add>, %28, %cst_10 [1, 2] : vector<1x8x1xf32> to vector<1xf32>
    %30 = vector.shape_cast %29 : vector<1xf32> to vector<1x1x1xf32>
    %31 = vector.extract %30[0, 0, 0] : f32 from vector<1x1x1xf32>
    %32 = vector.broadcast %31 : f32 to vector<1x1xf32>
    %33 = vector.shape_cast %32 : vector<1x1xf32> to vector<1x1x1xf32>
    %34 = vector.shape_cast %33 : vector<1x1x1xf32> to vector<1x1x1xf32>
    %35 = vector.broadcast %34 : vector<1x1x1xf32> to vector<1x8x128xf32>
    %c0_11 = arith.constant 0 : index
    %c0_12 = arith.constant 0 : index
    %c0_13 = arith.constant 0 : index
    %36 = vector.load %arg4[%c0_11, %c0_12, %c0_13] : memref<1x8x128xf32, #tpu.memory_space<vmem>>, vector<1x8x128xf32>
    tpu.vector_store %arg4[%c0_11, %c0_12, %c0_13], %35 {strides = array<i32>} : memref<1x8x128xf32, #tpu.memory_space<vmem>>, vector<1x8x128xf32>,
    return
  }
  func.func @transform_0(%arg0: i32) -> (i32, i32) {
    %c0_i32 = arith.constant 0 : i32
    %c0_i32_0 = arith.constant 0 : i32
    return %arg0, %c0_i32 : i32, i32
  }
  func.func @transform_1(%arg0: i32) -> (i32, i32) {
    %c0_i32 = arith.constant 0 : i32
    %c0_i32_0 = arith.constant 0 : i32
    return %arg0, %c0_i32 : i32, i32
  }
  func.func @transform_2(%arg0: i32) -> (i32, i32) {
    %c0_i32 = arith.constant 0 : i32
    %c0_i32_0 = arith.constant 0 : i32
    return %arg0, %c0_i32 : i32, i32
  }
  func.func @transform_3(%arg0: i32) -> (i32, i32, i32) {
    %c0_i32 = arith.constant 0 : i32
    %c0_i32_0 = arith.constant 0 : i32
    %c0_i32_1 = arith.constant 0 : i32
    return %arg0, %c0_i32, %c0_i32_0 : i32, i32, i32
  }
}

</mosaic_0001>

<llo_original>
// kernel: tpu_custom_call.1
$region0: #{tpu_custom_call.1}
  #allocation0 [shape = 'u32[]', space=smem, size = 0x4, offset = 0x4, fixed_abs, tag = 'smem constant byte address 0x4 - core index']
  #allocation1 [shape = 'u32[144,128]{1,0:T(1,128)}', space=vmem, size = 0x12000, scoped, tag = 'internal scratch']
  %s0 = inlined_call_operand.vmem [shape: f32[20,64], index: 0, kind: input, shape index: {}]
  %s1 = inlined_call_operand.hbm [shape: f32[20,64], index: 1, kind: input, shape index: {}]
  %s2 = inlined_call_operand.vmem [shape: f32[20,1], index: 2, kind: input, shape index: {}]
  %s3 = inlined_call_operand.hbm [shape: f32[3,8,128], index: 3, kind: output, shape index: {}]
  %s4 = sld [smem:[#allocation0]]
  $region49: #{tpu_custom_call.1} parent=0
    _
  %s6 = ssub.s32 1, %s4
  %s7 = scalar_select 0, %s6, %s4
  $region1: #{tpu_custom_call.1} parent=0
    #allocation2 [shape = 'u8[8192]{0}', space=vmem, size = 0x2000, scoped, tag = 'input window, operand 1']
    #allocation3 [shape = 's32[2]{0}', space=sflag, size = 0x8, scoped, tag = 'scoped memory for tpu_custom_call.1']
    #allocation4 [shape = 's32[2]{0}', space=sflag, size = 0x8, scoped, tag = 'scoped memory for tpu_custom_call.1']
    #allocation5 [shape = 'u8[8192]{0}', space=vmem, size = 0x2000, scoped, tag = 'output window, operand 0']
    %8 = vsyncpa [#allocation3], 0
    %s9 = scalar_lea.sflag [#allocation3], 1
    %10 = vsyncpa %s9, 0
    %11 = vsyncpa [#allocation4], 0
    %s12 = scalar_lea.sflag [#allocation4], 1
    %13 = vsyncpa %s12, 0
    loop: start=0, step=1, limit=5
    $region2: #{tpu_custom_call.1} parent=1 // loop_pre_header
      _
    $region3: #{tpu_custom_call.1} parent=1 // loop_header
      %s15 = sphi 0, %s19
      %p16 = scmp.ge.s32.totalorder %s15, 5
      %s25 = sphi 0, %s27
      %s28 = sphi 0, %s25
      %s29 = sphi 0, %s28
      %s45 = sphi 0, %s29
      %s51 = sphi 0, %s53
      %s54 = sphi 0, %s51
      %s55 = sphi 0, %s54
      %s71 = sphi 0, %s55
      %s77 = sphi 0, %s79
      %s80 = sphi 0, %s77
      %s81 = sphi 0, %s80
      %s97 = sphi 0, %s81
      %s103 = sphi 0, %s105
      %s106 = sphi 0, %s103
      %s107 = sphi 0, %s106
      %s123 = sphi 0, %s107
    $region4: #{tpu_custom_call.1} parent=1 // loop_header_branch
      %18 = sbr.rel (%p16) target = $region8
    $region5: #{tpu_custom_call.1} parent=1 // loop_body
      %s20 = ssub.s32 %s15, 1
      %s21 = ssub.s32 %s15, 2
      %s22 = sadd.s32 %s15, 1
      %s23 = ssub.s32 %s15, %s22
      %p24 = scmp.eq.s32.totalorder %s23, 0
      %s26 = sadd.s32 %s25, 1
      %s27 = scalar_select %p24, %s25, %s26
      %p30 = pneg %p24
      %p31 = scmp.eq.s32.totalorder %s15, 2
      %p32 = por %p30, %p31
      %p33 = scmp.ne.s32.totalorder %s25, %s28
      %p34 = scmp.eq.s32.totalorder %s15, 0
      %p35 = por %p33, %p34
      %p36 = scmp.ne.s32.totalorder %s25, %s28
      %p37 = scmp.eq.s32.totalorder %s20, 2
      %p38 = por %p36, %p37
      %p39 = scmp.ne.s32.totalorder %s28, %s29
      %p40 = scmp.eq.s32.totalorder %s20, 0
      %p41 = por %p39, %p40
      %p42 = scmp.ne.s32.totalorder %s28, %s29
      %p43 = scmp.eq.s32.totalorder %s21, 2
      %p44 = por %p42, %p43
      %p46 = scmp.ne.s32.totalorder %s29, %s45
      %p47 = scmp.eq.s32.totalorder %s21, 0
      %p48 = por %p46, %p47
      %s49 = ssub.s32 %s15, %s22
      %p50 = scmp.eq.s32.totalorder %s49, 0
      %s52 = sadd.s32 %s51, 1
      %s53 = scalar_select %p50, %s51, %s52
      %p56 = pneg %p50
      %p57 = scmp.eq.s32.totalorder %s15, 2
      %p58 = por %p56, %p57
      %p59 = scmp.ne.s32.totalorder %s51, %s54
      %p60 = scmp.eq.s32.totalorder %s15, 0
      %p61 = por %p59, %p60
      %p62 = scmp.ne.s32.totalorder %s51, %s54
      %p63 = scmp.eq.s32.totalorder %s20, 2
      %p64 = por %p62, %p63
      %p65 = scmp.ne.s32.totalorder %s54, %s55
      %p66 = scmp.eq.s32.totalorder %s20, 0
      %p67 = por %p65, %p66
      %p68 = scmp.ne.s32.totalorder %s54, %s55
      %p69 = scmp.eq.s32.totalorder %s21, 2
      %p70 = por %p68, %p69
      %p72 = scmp.ne.s32.totalorder %s55, %s71
      %p73 = scmp.eq.s32.totalorder %s21, 0
      %p74 = por %p72, %p73
      %s75 = ssub.s32 %s15, %s22
      %p76 = scmp.eq.s32.totalorder %s75, 0
      %s78 = sadd.s32 %s77, 1
      %s79 = scalar_select %p76, %s77, %s78
      %p82 = pneg %p76
      %p83 = scmp.eq.s32.totalorder %s15, 2
      %p84 = por %p82, %p83
      %p85 = scmp.ne.s32.totalorder %s77, %s80
      %p86 = scmp.eq.s32.totalorder %s15, 0
      %p87 = por %p85, %p86
      %p88 = scmp.ne.s32.totalorder %s77, %s80
      %p89 = scmp.eq.s32.totalorder %s20, 2
      %p90 = por %p88, %p89
      %p91 = scmp.ne.s32.totalorder %s80, %s81
      %p92 = scmp.eq.s32.totalorder %s20, 0
      %p93 = por %p91, %p92
      %p94 = scmp.ne.s32.totalorder %s80, %s81
      %p95 = scmp.eq.s32.totalorder %s21, 2
      %p96 = por %p94, %p95
      %p98 = scmp.ne.s32.totalorder %s81, %s97
      %p99 = scmp.eq.s32.totalorder %s21, 0
      %p100 = por %p98, %p99
      %s101 = ssub.s32 %s15, %s22
      %p102 = scmp.eq.s32.totalorder %s101, 0
      %s104 = sadd.s32 %s103, 1
      %s105 = scalar_select %p102, %s103, %s104
      %p108 = pneg %p102
      %p109 = scmp.eq.s32.totalorder %s15, 2
      %p110 = por %p108, %p109
      %p111 = scmp.ne.s32.totalorder %s103, %s106
      %p112 = scmp.eq.s32.totalorder %s15, 0
      %p113 = por %p111, %p112
      %p114 = scmp.ne.s32.totalorder %s103, %s106
      %p115 = scmp.eq.s32.totalorder %s20, 2
      %p116 = por %p114, %p115
      %p117 = scmp.ne.s32.totalorder %s106, %s107
      %p118 = scmp.eq.s32.totalorder %s20, 0
      %p119 = por %p117, %p118
      %p120 = scmp.ne.s32.totalorder %s106, %s107
      %p121 = scmp.eq.s32.totalorder %s21, 2
      %p122 = por %p120, %p121
      %p124 = scmp.ne.s32.totalorder %s107, %s123
      %p125 = scmp.eq.s32.totalorder %s21, 0
      %p126 = por %p124, %p125
      %p127 = scmp.le.s32.totalorder 1, %s15
      %p128 = scmp.lt.s32.totalorder %s15, 4
      %p129 = pnand %p127, %p128
      %p130 = pneg %p129
      // Predicated region
      $region9: #{tpu_custom_call.1} parent=5 // pred_check
        _
      $region10: #{tpu_custom_call.1} parent=5 // pred_check_branch
        %132 = sbr.rel (%p129) target = $region12
      $region11: #{tpu_custom_call.1} parent=5 // pred_region
        %s133 = ssub.s32 %s15, 1
      $region12: #{tpu_custom_call.1} parent=5 // pred_fallthru
        _
      %p134 = scmp.lt.s32.totalorder %s15, 3
      // Predicated region
      $region13: #{tpu_custom_call.1} parent=5 // pred_check
        %p135 = pneg %p134
      $region14: #{tpu_custom_call.1} parent=5 // pred_check_branch
        %137 = sbr.rel (%p135) target = $region16
      $region15: #{tpu_custom_call.1} parent=5 // pred_region
        // Predicated region
        $region17: #{tpu_custom_call.1} parent=15 // pred_check
          %p138 = pneg %p35
        $region18: #{tpu_custom_call.1} parent=15 // pred_check_branch
          %140 = sbr.rel (%p138) target = $region20
        $region19: #{tpu_custom_call.1} parent=15 // pred_region
          %p141 = scmp.lt.s32.totalorder %s15, 2
          %s142 = scalar_select %p141, %s15, 2
          %s143 = smul.addr %s142, 8
          %s144 = scalar_lea.vmem %s0, %s143
        $region20: #{tpu_custom_call.1} parent=15 // pred_fallthru
          _
        // Predicated region
        $region21: #{tpu_custom_call.1} parent=15 // pred_check
          %p145 = pneg %p61
        $region22: #{tpu_custom_call.1} parent=15 // pred_check_branch
          %147 = sbr.rel (%p145) target = $region24
        $region23: #{tpu_custom_call.1} parent=15 // pred_region
          %s148 = sand.u32 %s51, 1
          %s149 = scalar_lea.sflag [#allocation3], %s148
          %s150 = sand.u32 %s51, 1
          %s151 = smul.addr %s150, 8
          %s152 = scalar_lea.vmem [#allocation2], %s151
          %s154 = ssub.s32 128, 128
          %155 = vsyncadd %s149, %s154
          %s156 = smul.addr %s15, 128
          %s157 = scalar_lea.hbm %s1, %s156
          %s159 = sshll.u32 %s152, 4
          %s160 = int_to_ptr.vmem [resolvable:$true] %s159
          %162 = dma.hbm_to_vmem [thread:$0]  %s157, 128, %s160, %s149
        $region24: #{tpu_custom_call.1} parent=15 // pred_fallthru
          _
        // Predicated region
        $region25: #{tpu_custom_call.1} parent=15 // pred_check
          %p163 = pneg %p87
        $region26: #{tpu_custom_call.1} parent=15 // pred_check_branch
          %165 = sbr.rel (%p163) target = $region28
        $region27: #{tpu_custom_call.1} parent=15 // pred_region
          %p166 = scmp.lt.s32.totalorder %s15, 2
          %s167 = scalar_select %p166, %s15, 2
          %s168 = smul.addr %s167, 8
          %s169 = scalar_lea.vmem %s2, %s168
        $region28: #{tpu_custom_call.1} parent=15 // pred_fallthru
          _
      $region16: #{tpu_custom_call.1} parent=5 // pred_fallthru
        _
      %p170 = scmp.le.s32.totalorder 1, %s15
      %p171 = scmp.lt.s32.totalorder %s15, 4
      %p172 = pnand %p170, %p171
      %p173 = pneg %p172
      // Predicated region
      $region29: #{tpu_custom_call.1} parent=5 // pred_check
        _
      $region30: #{tpu_custom_call.1} parent=5 // pred_check_branch
        %175 = sbr.rel (%p172) target = $region32
      $region31: #{tpu_custom_call.1} parent=5 // pred_region
        %s176 = ssub.s32 %s15, 1
        %s177 = sand.u32 %s54, 1
        %s178 = scalar_lea.sflag [#allocation3], %s177
        %s179 = sand.u32 %s54, 1
        %s180 = smul.addr %s179, 8
        %s181 = scalar_lea.vmem [#allocation2], %s180
        // Predicated region
        $region33: #{tpu_custom_call.1} parent=31 // pred_check
          %p182 = pneg %p67
        $region34: #{tpu_custom_call.1} parent=31 // pred_check_branch
          %184 = sbr.rel (%p182) target = $region36
        $region35: #{tpu_custom_call.1} parent=31 // pred_region
          %185 = dma.done %s178, 128
        $region36: #{tpu_custom_call.1} parent=31 // pred_fallthru
          _
        %p186 = scmp.lt.s32.totalorder %s20, 2
        %s187 = scalar_select %p186, %s20, 2
        %s188 = smul.addr %s187, 8
        %s189 = scalar_lea.vmem %s0, %s188
        %p190 = pneg %p41
        %p191 = pneg %p38
        %s192 = sand.u32 %s54, 1
        %s193 = scalar_lea.sflag [#allocation3], %s192
        %s194 = sand.u32 %s54, 1
        %s195 = smul.addr %s194, 8
        %s196 = scalar_lea.vmem [#allocation2], %s195
        %p197 = pneg %p67
        %p198 = pneg %p64
        %p199 = scmp.lt.s32.totalorder %s20, 2
        %s200 = scalar_select %p199, %s20, 2
        %s201 = smul.addr %s200, 8
        %s202 = scalar_lea.vmem %s2, %s201
        %p203 = pneg %p93
        %p204 = pneg %p90
        %p205 = pneg %p119
        %p206 = pneg %p116
        %s207 = sand.u32 %s106, 1
        %s208 = scalar_lea.sflag [#allocation4], %s207
        %s209 = sand.u32 %s106, 1
        %s210 = smul.addr %s209, 8
        %s211 = scalar_lea.vmem [#allocation5], %s210
        %p212 = scmp.lt.s32.totalorder %s20, 2
        %s213 = scalar_select %p212, %s20, 2
        %s214 = smul.addr %s213, 8
        %s215 = scalar_lea.vmem %s0, %s214
        %p216 = scmp.lt.s32.totalorder %s20, 2
        %s217 = scalar_select %p216, %s20, 2
        %s218 = smul.addr %s217, 8
        %s219 = scalar_lea.vmem %s2, %s218
        %v220 = vld [vmem:[%s215] sm:$0xff]
        %v221 = vld [vmem:[%s181] sm:$0xff]
        %v222 = vld [vmem:[%s219] sm:$0xff]
        %v223 = vsub.f32 %v220, %v221
        %v224 = vadd.f32 %v223, 1e-06
        %v225 = vmul.f32 %v224, %v224
        %vm226 = vcmask 523264
        %v227 = vsel %vm226, %v225, 0.0
        %228 = vadd.xlane.f32.xlu0 %v227
        %v229 = vpop.xlane.xlu0 %228
        %v230 = vrsqrt.pop %v229
        %v231 = vmul.f32 %v229, %v230
        %vm232 = vcmp.eq.f32.partialorder %v229, inf
        %v233 = vsel %vm232, %v229, %v231
        %vm234 = vcmp.eq.f32.partialorder %v229, 0.0
        %v235 = vand.u32 %v229, 2147483648
        %v236 = vsel %vm234, %v235, %v233
        %v237 = vsub.f32 0.7, %v236
        %v238 = vmax.f32 %v237, 0.0
        %v239 = vsub.f32 1.0, %v222
        %v240 = vmul.f32 %v239, %v229
        %v241 = vmul.f32 %v238, %v238
        %v242 = vmul.f32 %v222, %v241
        %v243 = vadd.f32 %v240, %v242
        %v244 = vlaneseq
        %v245 = vshrl.u32 %v244, 7
        %s246 = smul.u32 %s20, 8
        %v247 = vstv %s246
        %v248 = vadd.s32 %v245, %v247
        %vm249 = vcmp.lt.s32.totalorder %v248, 20
        %v250 = vsel %vm249, %v243, 0.0
        %vm251 = vcmask 7168
        %v252 = vsel %vm251, %v250, 0.0
        %253 = vadd.xlane.f32.xlu0 %v252
        %v254 = vpop.xlane.xlu0 %253
        %v255 = vrot.slane %v254, 4
        %v256 = vadd.f32 %v254, %v255
        %v257 = vrot.slane %v256, 2
        %v258 = vadd.f32 %v256, %v257
        %v259 = vrot.slane %v258, 1
        %v260 = vadd.f32 %v258, %v259
        %s261 = vtos %v260
        %v262 = vstv %s261
        %263 = vst [vmem:[%s211] sm:$0xff] %v262
        %s264 = sand.u32 %s106, 1
        %s265 = scalar_lea.sflag [#allocation4], %s264
        %s266 = sand.u32 %s106, 1
        %s267 = smul.addr %s266, 8
        %s268 = scalar_lea.vmem [#allocation5], %s267
        // Predicated region
        $region37: #{tpu_custom_call.1} parent=31 // pred_check
          %p269 = pneg %p116
        $region38: #{tpu_custom_call.1} parent=31 // pred_check_branch
          %271 = sbr.rel (%p269) target = $region40
        $region39: #{tpu_custom_call.1} parent=31 // pred_region
          %s273 = ssub.s32 128, 128
          %274 = vsyncadd %s265, %s273
          %s275 = smul.addr %s20, 128
          %s276 = scalar_lea.hbm %s3, %s275
          %s278 = sshll.u32 %s268, 4
          %s279 = int_to_ptr.vmem [resolvable:$true] %s278
          %281 = dma.vmem_to_hbm [thread:$0]  %s279, 128, %s276, %s265
        $region40: #{tpu_custom_call.1} parent=31 // pred_fallthru
          _
      $region32: #{tpu_custom_call.1} parent=5 // pred_fallthru
        _
      %p282 = scmp.le.s32.totalorder 2, %s15
      // Predicated region
      $region41: #{tpu_custom_call.1} parent=5 // pred_check
        %p283 = pneg %p282
      $region42: #{tpu_custom_call.1} parent=5 // pred_check_branch
        %285 = sbr.rel (%p283) target = $region44
      $region43: #{tpu_custom_call.1} parent=5 // pred_region
        %s286 = ssub.s32 %s15, 2
        // Predicated region
        $region45: #{tpu_custom_call.1} parent=43 // pred_check
          %p287 = pneg %p122
        $region46: #{tpu_custom_call.1} parent=43 // pred_check_branch
          %289 = sbr.rel (%p287) target = $region48
        $region47: #{tpu_custom_call.1} parent=43 // pred_region
          %s290 = sand.u32 %s107, 1
          %s291 = scalar_lea.sflag [#allocation4], %s290
          %s292 = sand.u32 %s107, 1
          %s293 = smul.addr %s292, 8
          %s294 = scalar_lea.vmem [#allocation5], %s293
          %295 = dma.done %s291, 128
        $region48: #{tpu_custom_call.1} parent=43 // pred_fallthru
          _
      $region44: #{tpu_custom_call.1} parent=5 // pred_fallthru
        _
    $region6: #{tpu_custom_call.1} parent=1 // loop_footer
      %s19 = sadd.s32 1, %s15
    $region7: #{tpu_custom_call.1} parent=1 // loop_footer_branch
      %14 = sbr.rel target = $region3
    $region8: #{tpu_custom_call.1} parent=1 // loop_exit
      _
    %296 = vsyncpa [#allocation3], 1
    %s297 = scalar_lea.sflag [#allocation3], 1
    %298 = vsyncpa %s297, 1
    %299 = vsyncpa [#allocation4], 1
    %s300 = scalar_lea.sflag [#allocation4], 1
    %301 = vsyncpa %s300, 1

</llo_original>
